<compile_context>
chip_gen: v7x
topology: tpu7x:2x2x1
jax: 0.10.0
libtpu: 0.0.40
codegen_flags: <defaults>
</compile_context>

<pallas_src>
import functools

import jax
import jax.numpy as jnp
from jax.experimental import pallas as pl
from jax.experimental.pallas import tpu as pltpu


def _round_up(x: int, m: int) -> int:
    return ((x + m - 1) // m) * m


def _round_down(x: int, m: int) -> int:
    return (x // m) * m


def _mean_pool_kernel(emb_ref, mask_ref, out_ref, acc_ref, cnt_ref,
                      *, seq_len: int, seq_tile: int):
    # emb_ref:  (tb, ts, th)  native dtype
    # mask_ref: (tb, 1, ts)   int/float mask
    # out_ref:  (tb, th)      float32
    # acc_ref:  (tb, th)      f32 scratch (masked-sum accumulator)
    # cnt_ref:  (tb, 1)       f32 scratch (valid-token count accumulator)
    si = pl.program_id(2)

    @pl.when(si == 0)
    def _init():
        acc_ref[...] = jnp.zeros_like(acc_ref)
        cnt_ref[...] = jnp.zeros_like(cnt_ref)

    emb = emb_ref[...]                                   # (tb, ts, th)
    mask_f = mask_ref[...].astype(jnp.float32)           # (tb, 1, ts)

    if seq_len % seq_tile != 0:
        # Tail guard: the last seq tile extends past S; its OOB slots hold
        # garbage (possibly NaN).  Zero both emb and mask there so neither the
        # contraction (0 * NaN) nor the count can pick anything up.
        base = si * seq_tile
        pos_lane = base + jax.lax.broadcasted_iota(jnp.int32, (1, 1, seq_tile), 2)
        pos_sub = base + jax.lax.broadcasted_iota(jnp.int32, (1, seq_tile, 1), 1)
        mask_f = jnp.where(pos_lane < seq_len, mask_f, 0.0)
        emb = jnp.where(pos_sub < seq_len, emb, jnp.zeros((), emb.dtype))

    # Masked sum over this seq tile as a batched MXU contraction:
    # (tb, 1, ts) @ (tb, ts, th) -> (tb, 1, th), accumulated in f32.
    part = jnp.einsum("bks,bsh->bkh", mask_f.astype(emb.dtype), emb,
                      preferred_element_type=jnp.float32)
    acc_ref[...] += part[:, 0, :]
    # Valid-token count for this tile (lane reduce over ts).
    cnt_ref[...] += jnp.sum(mask_f, axis=2)              # (tb, 1)

    @pl.when(si == pl.num_programs(2) - 1)
    def _finalize():
        denom = jnp.maximum(cnt_ref[...], 1e-9)          # torch.clamp(min=1e-9)
        out_ref[...] = (acc_ref[...] / denom).astype(out_ref.dtype)


def mean_pooling(
    token_embeddings: jax.Array,
    attention_mask: jax.Array,
    *,
    seq_tile: int | None = None,
    h_tile: int | None = None,
) -> jax.Array:
    """token_embeddings: [B, S, H]; attention_mask: [B, S] -> [B, H] float32."""
    B, S, H = token_embeddings.shape
    emb_dtype = token_embeddings.dtype
    itemsize = jnp.dtype(emb_dtype).itemsize
    mask_itemsize = jnp.dtype(attention_mask.dtype).itemsize

    # ---- generation-aware block budget --------------------------------------
    try:
        vmem_cap = int(getattr(pltpu.get_tpu_info(), "vmem_capacity_bytes", 0))
    except Exception:
        vmem_cap = 0
    if vmem_cap >= 100 * 1024 * 1024:          # v5e/v6e: 128 MiB VMEM per TC
        target_bytes = 16 * 1024 * 1024
        vmem_limit = 64 * 1024 * 1024
    else:                                      # v7x (64 MiB per TC) or unknown
        target_bytes = 12 * 1024 * 1024
        vmem_limit = 48 * 1024 * 1024

    # ---- batch tile (output sublane dim: multiple of 8, or the full B) ------
    tb = B if B <= 8 else 8
    grid_b = pl.cdiv(B, tb)

    # ---- hidden tile ---------------------------------------------------------
    if h_tile is not None:
        th = min(H, max(128, _round_down(h_tile, 128)))
    elif H > 128 and tb * H * itemsize * 256 > target_bytes:
        # Full-H rows would force the seq tile below 256: tile H instead.
        th = max(128, _round_down(target_bytes // (tb * 256 * itemsize), 128))
        th = min(th, H)
    else:
        th = H
    # v7x megacore: if the batch axis has a single block, split H so the
    # "parallel" axes still expose >= 2 blocks (harmless on 1-TC chips).
    if grid_b == 1 and th == H and H >= 256:
        th = max(128, _round_down(_round_up(H, 128) // 2, 128))
    grid_h = pl.cdiv(H, th)

    # ---- sequence tile -------------------------------------------------------
    row_bytes = max(tb * th * itemsize, 1)
    if seq_tile is not None:
        ts = max(128, _round_down(seq_tile, 128))
    else:
        ts = max(128, _round_down(target_bytes // row_bytes, 128))
    if ts >= S:
        ts = S                                 # single full-extent seq block
    grid_s = pl.cdiv(S, ts)

    # (B, S) -> (B, 1, S): metadata-only for a row-major array; the (tb, 1, ts)
    # tile then lands in exactly the layout the contraction consumes.
    mask3 = attention_mask.reshape(B, 1, S)

    kernel = functools.partial(_mean_pool_kernel, seq_len=S, seq_tile=ts)

    out = pl.pallas_call(
        kernel,
        out_shape=jax.ShapeDtypeStruct((B, H), jnp.float32),
        grid_spec=pltpu.PrefetchScalarGridSpec(
            num_scalar_prefetch=0,
            grid=(grid_b, grid_h, grid_s),
            in_specs=[
                pl.BlockSpec((tb, ts, th), lambda b, h, s: (b, s, h)),
                pl.BlockSpec((tb, 1, ts), lambda b, h, s: (b, 0, s)),
            ],
            out_specs=pl.BlockSpec((tb, th), lambda b, h, s: (b, h)),
            scratch_shapes=[
                pltpu.VMEM((tb, th), jnp.float32),
                pltpu.VMEM((tb, 1), jnp.float32),
            ],
        ),
        compiler_params=pltpu.CompilerParams(
            dimension_semantics=("parallel", "parallel", "arbitrary"),
            vmem_limit_bytes=vmem_limit,
        ),
        cost_estimate=pl.CostEstimate(
            flops=2 * B * S * H,
            transcendentals=0,
            bytes_accessed=B * S * H * itemsize
            + B * S * mask_itemsize * grid_h
            + B * H * 4,
        ),
    )(token_embeddings, mask3)

    return out


def _reference(token_embeddings, attention_mask):
    mask = attention_mask[..., None].astype(jnp.float32)
    emb = token_embeddings.astype(jnp.float32)
    return jnp.sum(emb * mask, axis=1) / jnp.clip(jnp.sum(mask, axis=1), 1e-9)


if __name__ == "__main__":
    key = jax.random.PRNGKey(0)
    k1, k2, k3, k4, k5, k6 = jax.random.split(key, 6)

    # Case 1: tiny shapes matching the module spec (single block per axis).
    B, S, H = 2, 8, 32
    emb = jax.random.normal(k1, (B, S, H), dtype=jnp.float32)
    mask = (jax.random.uniform(k2, (B, S)) > 0.3).astype(jnp.int32)
    out = mean_pooling(emb, mask)
    jax.block_until_ready(out)
    ref = _reference(emb, mask)
    assert out.shape == (B, H) and out.dtype == jnp.float32
    assert jnp.allclose(out, ref, atol=1e-5, rtol=1e-5)

    # Case 2: partial batch block (no padding), multi-step seq axis with an
    # unaligned tail (exercises the in-kernel validity guard), bf16 input.
    B2, S2, H2 = 10, 320, 32
    emb2 = jax.random.normal(k3, (B2, S2, H2), dtype=jnp.bfloat16)
    mask2 = (jax.random.uniform(k4, (B2, S2)) > 0.3).astype(jnp.int32)
    out2 = mean_pooling(emb2, mask2, seq_tile=128)
    jax.block_until_ready(out2)
    ref2 = _reference(emb2, mask2)
    assert out2.shape == (B2, H2) and out2.dtype == jnp.float32
    assert jnp.allclose(out2, ref2, atol=2e-2, rtol=2e-2)

    # Case 3: single batch block -> forced H split (megacore parallel axis).
    B3, S3, H3 = 2, 160, 384
    emb3 = jax.random.normal(k5, (B3, S3, H3), dtype=jnp.float32)
    mask3 = (jax.random.uniform(k6, (B3, S3)) > 0.3).astype(jnp.int32)
    out3 = mean_pooling(emb3, mask3)
    jax.block_until_ready(out3)
    ref3 = _reference(emb3, mask3)
    assert out3.shape == (B3, H3) and out3.dtype == jnp.float32
    assert jnp.allclose(out3, ref3, atol=1e-5, rtol=1e-5)

    print("KERNEL_OK")
</pallas_src>

<mosaic_0001>
module attributes {stable_mosaic.version = 11 : i64} {
  func.func @_mean_pool_kernel(%arg0: i32, %arg1: i32, %arg2: i32, %arg3: memref<2x8x32xf32, #tpu.memory_space<vmem>>, %arg4: memref<2x1x8xi32, #tpu.memory_space<vmem>>, %arg5: memref<2x32xf32, #tpu.memory_space<vmem>>, %arg6: memref<2x32xf32, #tpu.memory_space<vmem>>, %arg7: memref<2x1xf32, #tpu.memory_space<vmem>>) attributes {dimension_semantics = [#tpu.dimension_semantics<parallel>, #tpu.dimension_semantics<parallel>, #tpu.dimension_semantics<arbitrary>], iteration_bounds = array<i64: 1, 1, 1>, scalar_prefetch = 0 : i64, scratch_operands = 2 : i64, tpu.core_type = #tpu.core_type<tc>, window_params = [{transform_indices = @transform_0, window_bounds = array<i64: 2, 8, 32>}, {transform_indices = @transform_1, window_bounds = array<i64: 2, 1, 8>}, {transform_indices = @transform_2, window_bounds = array<i64: 2, 32>}]} {
    %c0_i32 = arith.constant 0 : i32
    %0 = arith.cmpi eq, %arg2, %c0_i32 : i32
    %1 = arith.extui %0 : i1 to i32
    %c0_i32_0 = arith.constant 0 : i32
    %2 = arith.cmpi ne, %1, %c0_i32_0 : i32
    scf.if %2 {
      %cst_17 = arith.constant 0.000000e+00 : f32
      %18 = vector.broadcast %cst_17 : f32 to vector<2x32xf32>
      %c0_18 = arith.constant 0 : index
      %c0_19 = arith.constant 0 : index
      %19 = vector.load %arg6[%c0_18, %c0_19] : memref<2x32xf32, #tpu.memory_space<vmem>>, vector<2x32xf32>
      tpu.vector_store %arg6[%c0_18, %c0_19], %18 {strides = array<i32>} : memref<2x32xf32, #tpu.memory_space<vmem>>, vector<2x32xf32>,
      %cst_20 = arith.constant 0.000000e+00 : f32
      %20 = vector.broadcast %cst_20 : f32 to vector<2x1xf32>
      %c0_21 = arith.constant 0 : index
      %c0_22 = arith.constant 0 : index
      %21 = vector.load %arg7[%c0_21, %c0_22] : memref<2x1xf32, #tpu.memory_space<vmem>>, vector<2x1xf32>
      tpu.vector_store %arg7[%c0_21, %c0_22], %20 {strides = array<i32>} : memref<2x1xf32, #tpu.memory_space<vmem>>, vector<2x1xf32>,
    } else {
    }
    %c0 = arith.constant 0 : index
    %c0_1 = arith.constant 0 : index
    %c0_2 = arith.constant 0 : index
    %3 = vector.load %arg3[%c0, %c0_1, %c0_2] : memref<2x8x32xf32, #tpu.memory_space<vmem>>, vector<2x8x32xf32>
    %c0_3 = arith.constant 0 : index
    %c0_4 = arith.constant 0 : index
    %c0_5 = arith.constant 0 : index
    %4 = vector.load %arg4[%c0_3, %c0_4, %c0_5] : memref<2x1x8xi32, #tpu.memory_space<vmem>>, vector<2x1x8xi32>
    %5 = arith.sitofp %4 : vector<2x1x8xi32> to vector<2x1x8xf32>
    "tpu.trace_start"() <{level = 10 : i32, message = "bks,bsh->bkh"}> : () -> ()
    %cst = arith.constant dense<0.000000e+00> : vector<2x1x32xf32>
    %6 = tpu.matmul %5, %3, %cst {dimension_numbers = #tpu.dot_dimension_numbers<[2], [1], [1], [2], [0, 0, 0, 1, 1, 2], [0], [0]>} : vector<2x1x8xf32>, vector<2x8x32xf32>, vector<2x1x32xf32> -> vector<2x1x32xf32>
    "tpu.trace_stop"() : () -> ()
    %c0_6 = arith.constant 0 : index
    %c0_7 = arith.constant 0 : index
    %7 = vector.load %arg6[%c0_6, %c0_7] : memref<2x32xf32, #tpu.memory_space<vmem>>, vector<2x32xf32>
    %8 = vector.shape_cast %6 : vector<2x1x32xf32> to vector<2x32xf32>
    %9 = arith.addf %7, %8 : vector<2x32xf32>
    %c0_8 = arith.constant 0 : index
    %c0_9 = arith.constant 0 : index
    %10 = vector.load %arg6[%c0_8, %c0_9] : memref<2x32xf32, #tpu.memory_space<vmem>>, vector<2x32xf32>
    tpu.vector_store %arg6[%c0_8, %c0_9], %9 {strides = array<i32>} : memref<2x32xf32, #tpu.memory_space<vmem>>, vector<2x32xf32>,
    %c0_10 = arith.constant 0 : index
    %c0_11 = arith.constant 0 : index
    %11 = vector.load %arg7[%c0_10, %c0_11] : memref<2x1xf32, #tpu.memory_space<vmem>>, vector<2x1xf32>
    %cst_12 = arith.constant dense<0.000000e+00> : vector<2x1xf32>
    %12 = vector.multi_reduction <add>, %5, %cst_12 [2] : vector<2x1x8xf32> to vector<2x1xf32>
    %13 = arith.addf %11, %12 : vector<2x1xf32>
    %c0_13 = arith.constant 0 : index
    %c0_14 = arith.constant 0 : index
    %14 = vector.load %arg7[%c0_13, %c0_14] : memref<2x1xf32, #tpu.memory_space<vmem>>, vector<2x1xf32>
    tpu.vector_store %arg7[%c0_13, %c0_14], %13 {strides = array<i32>} : memref<2x1xf32, #tpu.memory_space<vmem>>, vector<2x1xf32>,
    %c0_i32_15 = arith.constant 0 : i32
    %15 = arith.cmpi eq, %arg2, %c0_i32_15 : i32
    %16 = arith.extui %15 : i1 to i32
    %c0_i32_16 = arith.constant 0 : i32
    %17 = arith.cmpi ne, %16, %c0_i32_16 : i32
    scf.if %17 {
      %c0_17 = arith.constant 0 : index
      %c0_18 = arith.constant 0 : index
      %18 = vector.load %arg7[%c0_17, %c0_18] : memref<2x1xf32, #tpu.memory_space<vmem>>, vector<2x1xf32>
      %cst_19 = arith.constant 9.99999971E-10 : f32
      %19 = vector.broadcast %cst_19 : f32 to vector<2x1xf32>
      %20 = arith.maximumf %18, %19 : vector<2x1xf32>
      %c0_20 = arith.constant 0 : index
      %c0_21 = arith.constant 0 : index
      %21 = vector.load %arg6[%c0_20, %c0_21] : memref<2x32xf32, #tpu.memory_space<vmem>>, vector<2x32xf32>
      %22 = vector.broadcast %20 : vector<2x1xf32> to vector<2x32xf32>
      %23 = arith.divf %21, %22 : vector<2x32xf32>
      %c0_22 = arith.constant 0 : index
      %c0_23 = arith.constant 0 : index
      %24 = vector.load %arg5[%c0_22, %c0_23] : memref<2x32xf32, #tpu.memory_space<vmem>>, vector<2x32xf32>
      tpu.vector_store %arg5[%c0_22, %c0_23], %23 {strides = array<i32>} : memref<2x32xf32, #tpu.memory_space<vmem>>, vector<2x32xf32>,
    } else {
    }
    return
  }
  func.func @transform_0(%arg0: i32, %arg1: i32, %arg2: i32) -> (i32, i32, i32) {
    %c0_i32 = arith.constant 0 : i32
    return %arg0, %arg2, %arg1 : i32, i32, i32
  }
  func.func @transform_1(%arg0: i32, %arg1: i32, %arg2: i32) -> (i32, i32, i32) {
    %c0_i32 = arith.constant 0 : i32
    %c0_i32_0 = arith.constant 0 : i32
    return %arg0, %c0_i32, %arg2 : i32, i32, i32
  }
  func.func @transform_2(%arg0: i32, %arg1: i32, %arg2: i32) -> (i32, i32) {
    %c0_i32 = arith.constant 0 : i32
    return %arg0, %arg1 : i32, i32
  }
}

</mosaic_0001>

<llo_original>
// kernel: tpu_custom_call.1
$region0: #{tpu_custom_call.1}
  #allocation0 [shape = 'u32[]', space=smem, size = 0x4, offset = 0x4, fixed_abs, tag = 'smem constant byte address 0x4 - core index']
  #allocation1 [shape = 'u32[144,128]{1,0:T(1,128)}', space=vmem, size = 0x12000, scoped, tag = 'internal scratch']
  #allocation2 [shape = 'f32[2,32]{1,0:T(2,128)}', space=vmem, size = 0x400, scoped, tag = 'scratch operand']
  #allocation3 [shape = 'f32[2,1]{1,0:T(2,128)}', space=vmem, size = 0x400, scoped, tag = 'scratch operand']
  %s0 = inlined_call_operand.hbm [shape: f32[2,8,32], index: 0, kind: input, shape index: {}]
  %s1 = inlined_call_operand.vmem [shape: s32[2,1,8], index: 1, kind: input, shape index: {}]
  %s2 = inlined_call_operand.hbm [shape: f32[2,32], index: 2, kind: output, shape index: {}]
  %s3 = sld [smem:[#allocation0]]
  $region30: #{tpu_custom_call.1} parent=0
    _
  %s5 = ssub.s32 1, %s3
  %s6 = scalar_select 0, %s5, %s3
  $region1: #{tpu_custom_call.1} parent=0
    #allocation4 [shape = 'u8[8192]{0}', space=vmem, size = 0x2000, scoped, tag = 'input window, operand 0, single buffered']
    #allocation5 [shape = 's32[1]{0}', space=sflag, size = 0x4, scoped, tag = 'scoped memory for tpu_custom_call.1']
    #allocation6 [shape = 's32[1]{0}', space=sflag, size = 0x4, scoped, tag = 'scoped memory for tpu_custom_call.1']
    #allocation7 [shape = 'u8[1024]{0}', space=vmem, size = 0x400, scoped, tag = 'output window, operand 0, single buffered']
    %7 = vsyncpa [#allocation5], 0
    %8 = vsyncpa [#allocation6], 0
    // Predicated region
    $region2: #{tpu_custom_call.1} parent=1 // pred_check
      _
    $region3: #{tpu_custom_call.1} parent=1 // pred_check_branch
      %10 = sbr.rel (0) target = $region5
    $region4: #{tpu_custom_call.1} parent=1 // pred_region
      %s12 = ssub.s32 256, 256
      %13 = vsyncadd [#allocation5], %s12
      %s14 = sshll.u32 [#allocation4], 4
      %s15 = int_to_ptr.vmem [resolvable:$true] %s14
      %20 = dma.hbm_to_vmem [thread:$0]  %s0, 256, %s15, [#allocation5], 128, 128, 8
    $region5: #{tpu_custom_call.1} parent=1 // pred_fallthru
      _
    // Predicated region
    $region6: #{tpu_custom_call.1} parent=1 // pred_check
      _
    $region7: #{tpu_custom_call.1} parent=1 // pred_check_branch
      %22 = sbr.rel (0) target = $region9
    $region8: #{tpu_custom_call.1} parent=1 // pred_region
      _
    $region9: #{tpu_custom_call.1} parent=1 // pred_fallthru
      _
    // Predicated region
    $region10: #{tpu_custom_call.1} parent=1 // pred_check
      _
    $region11: #{tpu_custom_call.1} parent=1 // pred_check_branch
      %24 = sbr.rel (0) target = $region13
    $region12: #{tpu_custom_call.1} parent=1 // pred_region
      %25 = dma.done [#allocation5], 256
    $region13: #{tpu_custom_call.1} parent=1 // pred_fallthru
      _
    %p26 = scmp.eq.s32.totalorder 0, 0
    // Predicated region
    $region14: #{tpu_custom_call.1} parent=1 // pred_check
      %p27 = pneg %p26
    $region15: #{tpu_custom_call.1} parent=1 // pred_check_branch
      %29 = sbr.rel (%p27) target = $region17
    $region16: #{tpu_custom_call.1} parent=1 // pred_region
      %vm30 = vcmask 254976
      %31 = vst.msk [vmem:[#allocation2] sm:$0x3] %vm30, 0.0
      %vm32 = vcmask 1024
      %33 = vst.msk [vmem:[#allocation3] sm:$0x3] %vm32, 0.0
    $region17: #{tpu_custom_call.1} parent=1 // pred_fallthru
      _
    %v34 = vld [vmem:[#allocation4] sm:$0xff]
    %v35 = vld [vmem:[#allocation4 + $0x8] sm:$0xff]
    %v36 = vld [vmem:[%s1] sm:$0x1]
    %v37 = vld [vmem:[%s1 + $0x1] sm:$0x1]
    %v38 = vcvt.s32.f32 %v36
    %v39 = vcvt.s32.f32 %v37
    %vm40 = vcmask 64512
    %v42 = vsel %vm40, %v38, 0
    %44 = vmatprep.subr.mxu0 0.0
    %45 = vmatpush1.msra.mxu0 %v34
    %46 = vmatprep.subr.mxu0 0.0
    %47 = vmatpush1.msra.mxu0 0.0
    %48 = vmatprep.subr.mxu0 0.0
    %49 = vmatpush1.msra.mxu0 0.0
    %50 = vmatprep.subr.mxu0 0.0
    %51 = vmatpush1.msra.mxu0 0.0
    %52 = vmatprep.subr.mxu0 0.0
    %53 = vmatpush1.msra.mxu0 0.0
    %54 = vmatprep.subr.mxu0 0.0
    %55 = vmatpush1.msra.mxu0 0.0
    %56 = vmatprep.subr.mxu0 0.0
    %57 = vmatpush1.msra.mxu0 0.0
    %58 = vmatprep.subr.mxu0 0.0
    %59 = vmatpush1.msra.mxu0 0.0
    %60 = vmatprep.subr.mxu0 0.0
    %61 = vmatpush1.msra.mxu0 0.0
    %62 = vmatprep.subr.mxu0 0.0
    %63 = vmatpush1.msra.mxu0 0.0
    %64 = vmatprep.subr.mxu0 0.0
    %65 = vmatpush1.msra.mxu0 0.0
    %66 = vmatprep.subr.mxu0 0.0
    %67 = vmatpush1.msra.mxu0 0.0
    %68 = vmatprep.subr.mxu0 0.0
    %69 = vmatpush1.msra.mxu0 0.0
    %70 = vmatprep.subr.mxu0 0.0
    %71 = vmatpush1.msra.mxu0 0.0
    %72 = vmatprep.subr.mxu0 0.0
    %73 = vmatpush1.msra.mxu0 0.0
    %74 = vmatprep.subr.mxu0 0.0
    %75 = vmatpush1.msra.mxu0 0.0
    %76 = vmatprep.subr.mxu0 0.0
    %77 = vmatpush1.msra.mxu0 0.0
    %78 = vmatprep.subr.mxu0 0.0
    %79 = vmatpush1.msra.mxu0 0.0
    %80 = vmatprep.subr.mxu0 0.0
    %81 = vmatpush1.msra.mxu0 0.0
    %82 = vmatprep.subr.mxu0 0.0
    %83 = vmatpush1.msra.mxu0 0.0
    %84 = vmatprep.subr.mxu0 0.0
    %85 = vmatpush1.msra.mxu0 0.0
    %86 = vmatprep.subr.mxu0 0.0
    %87 = vmatpush1.msra.mxu0 0.0
    %88 = vmatprep.subr.mxu0 0.0
    %89 = vmatpush1.msra.mxu0 0.0
    %90 = vmatprep.subr.mxu0 0.0
    %91 = vmatpush1.msra.mxu0 0.0
    %92 = vmatprep.subr.mxu0 0.0
    %93 = vmatpush1.msra.mxu0 0.0
    %94 = vmatprep.subr.mxu0 0.0
    %95 = vmatpush1.msra.mxu0 0.0
    %96 = vmatprep.subr.mxu0 0.0
    %97 = vmatpush1.msra.mxu0 0.0
    %98 = vmatprep.subr.mxu0 0.0
    %99 = vmatpush1.msra.mxu0 0.0
    %100 = vmatprep.subr.mxu0 0.0
    %101 = vmatpush1.msra.mxu0 0.0
    %102 = vmatprep.subr.mxu0 0.0
    %103 = vmatpush1.msra.mxu0 0.0
    %104 = vmatprep.subr.mxu0 0.0
    %105 = vmatpush1.msra.mxu0 0.0
    %106 = vmatprep.subr.mxu0 0.0
    %107 = vmatpush1.msra.mxu0 0.0
    %108 = vmatprep.mubr.f32.mxu0 0.0
    %109 = vmatmul.mubr.f32.gmra.mrb[0].mxu0 %v42
    %v110 = vpop.f32.mrb[0].mxu0
    %v111 = vadd.f32 0.0, %v110
    %v112 = vpop.f32.mrb[0].mxu0
    %113 = vdwg.mxu0
    %v115 = vsel %vm40, %v39, 0
    %117 = vmatprep.subr.mxu0 0.0
    %118 = vmatpush1.msra.mxu0 %v35
    %119 = vmatprep.subr.mxu0 0.0
    %120 = vmatpush1.msra.mxu0 0.0
    %121 = vmatprep.subr.mxu0 0.0
    %122 = vmatpush1.msra.mxu0 0.0
    %123 = vmatprep.subr.mxu0 0.0
    %124 = vmatpush1.msra.mxu0 0.0
    %125 = vmatprep.subr.mxu0 0.0
    %126 = vmatpush1.msra.mxu0 0.0
    %127 = vmatprep.subr.mxu0 0.0
    %128 = vmatpush1.msra.mxu0 0.0
    %129 = vmatprep.subr.mxu0 0.0
    %130 = vmatpush1.msra.mxu0 0.0
    %131 = vmatprep.subr.mxu0 0.0
    %132 = vmatpush1.msra.mxu0 0.0
    %133 = vmatprep.subr.mxu0 0.0
    %134 = vmatpush1.msra.mxu0 0.0
    %135 = vmatprep.subr.mxu0 0.0
    %136 = vmatpush1.msra.mxu0 0.0
    %137 = vmatprep.subr.mxu0 0.0
    %138 = vmatpush1.msra.mxu0 0.0
    %139 = vmatprep.subr.mxu0 0.0
    %140 = vmatpush1.msra.mxu0 0.0
    %141 = vmatprep.subr.mxu0 0.0
    %142 = vmatpush1.msra.mxu0 0.0
    %143 = vmatprep.subr.mxu0 0.0
    %144 = vmatpush1.msra.mxu0 0.0
    %145 = vmatprep.subr.mxu0 0.0
    %146 = vmatpush1.msra.mxu0 0.0
    %147 = vmatprep.subr.mxu0 0.0
    %148 = vmatpush1.msra.mxu0 0.0
    %149 = vmatprep.subr.mxu0 0.0
    %150 = vmatpush1.msra.mxu0 0.0
    %151 = vmatprep.subr.mxu0 0.0
    %152 = vmatpush1.msra.mxu0 0.0
    %153 = vmatprep.subr.mxu0 0.0
    %154 = vmatpush1.msra.mxu0 0.0
    %155 = vmatprep.subr.mxu0 0.0
    %156 = vmatpush1.msra.mxu0 0.0
    %157 = vmatprep.subr.mxu0 0.0
    %158 = vmatpush1.msra.mxu0 0.0
    %159 = vmatprep.subr.mxu0 0.0
    %160 = vmatpush1.msra.mxu0 0.0
    %161 = vmatprep.subr.mxu0 0.0
    %162 = vmatpush1.msra.mxu0 0.0
    %163 = vmatprep.subr.mxu0 0.0
    %164 = vmatpush1.msra.mxu0 0.0
    %165 = vmatprep.subr.mxu0 0.0
    %166 = vmatpush1.msra.mxu0 0.0
    %167 = vmatprep.subr.mxu0 0.0
    %168 = vmatpush1.msra.mxu0 0.0
    %169 = vmatprep.subr.mxu0 0.0
    %170 = vmatpush1.msra.mxu0 0.0
    %171 = vmatprep.subr.mxu0 0.0
    %172 = vmatpush1.msra.mxu0 0.0
    %173 = vmatprep.subr.mxu0 0.0
    %174 = vmatpush1.msra.mxu0 0.0
    %175 = vmatprep.subr.mxu0 0.0
    %176 = vmatpush1.msra.mxu0 0.0
    %177 = vmatprep.subr.mxu0 0.0
    %178 = vmatpush1.msra.mxu0 0.0
    %179 = vmatprep.subr.mxu0 0.0
    %180 = vmatpush1.msra.mxu0 0.0
    %181 = vmatprep.mubr.f32.mxu0 0.0
    %182 = vmatmul.mubr.f32.gmra.mrb[0].mxu0 %v115
    %v183 = vpop.f32.mrb[0].mxu0
    %v184 = vadd.f32 0.0, %v183
    %v185 = vpop.f32.mrb[0].mxu0
    %186 = vdwg.mxu0
    %v187 = vld [vmem:[#allocation2] sm:$0x3]
    %v190 = vrot.slane %v184, 7
    %vm191 = vcmask 1041409
    %v192 = vsel %vm191, %v190, %v111
    %v194 = vadd.f32 %v187, %v192
    %vm195 = vcmask 254976
    %196 = vst.msk [vmem:[#allocation2] sm:$0x3] %vm195, %v194
    %v197 = vld [vmem:[#allocation3] sm:$0x3]
    %vm198 = vcmask 57344
    %v199 = vsel %vm198, %v38, 0.0
    %200 = vadd.xlane.f32.xlu0 %v199
    %v201 = vpop.xlane.xlu0 %200
    %v202 = vsel %vm198, %v39, 0.0
    %203 = vadd.xlane.f32.xlu0 %v202
    %v204 = vpop.xlane.xlu0 %203
    %v207 = vrot.slane %v204, 7
    %v208 = vsel %vm191, %v207, %v201
    %v210 = vadd.f32 %v197, %v208
    %vm211 = vcmask 1024
    %212 = vst.msk [vmem:[#allocation3] sm:$0x3] %vm211, %v210
    // Predicated region
    $region18: #{tpu_custom_call.1} parent=1 // pred_check
      %p213 = pneg %p26
    $region19: #{tpu_custom_call.1} parent=1 // pred_check_branch
      %215 = sbr.rel (%p213) target = $region21
    $region20: #{tpu_custom_call.1} parent=1 // pred_region
      %v216 = vld [vmem:[#allocation3] sm:$0x3]
      %v217 = vmax.f32 %v216, 1e-09
      %v218 = vld [vmem:[#allocation2] sm:$0x3]
      %220 = vset.pattern.permute.xlu0 0
      %221 = vperm.xlu0 %220, %v217
      %v222 = vpop.permute.xlu0 %221
      %v224 = vrcp.pop %v222
      %v225 = vmul.f32 %v218, %v224
      %226 = vst.msk [vmem:[#allocation7] sm:$0x3] %vm195, %v225
    $region21: #{tpu_custom_call.1} parent=1 // pred_fallthru
      _
    // Predicated region
    $region22: #{tpu_custom_call.1} parent=1 // pred_check
      _
    $region23: #{tpu_custom_call.1} parent=1 // pred_check_branch
      %228 = sbr.rel (0) target = $region25
    $region24: #{tpu_custom_call.1} parent=1 // pred_region
      %s230 = ssub.s32 32, 32
      %231 = vsyncadd [#allocation6], %s230
      %s233 = sshll.u32 [#allocation7], 4
      %s234 = int_to_ptr.vmem [resolvable:$true] %s233
      %236 = dma.vmem_to_hbm [thread:$0]  %s234, 32, %s2, [#allocation6]
    $region25: #{tpu_custom_call.1} parent=1 // pred_fallthru
      _
    // Predicated region
    $region26: #{tpu_custom_call.1} parent=1 // pred_check
      _
    $region27: #{tpu_custom_call.1} parent=1 // pred_check_branch
      %238 = sbr.rel (0) target = $region29
    $region28: #{tpu_custom_call.1} parent=1 // pred_region
      %239 = dma.done [#allocation6], 32
    $region29: #{tpu_custom_call.1} parent=1 // pred_fallthru
      _
    %240 = vsyncpa [#allocation5], 1
    %241 = vsyncpa [#allocation6], 1

</llo_original>
